<compile_context>
chip_gen: v7x
topology: tpu7x:2x2x1
jax: 0.10.0
libtpu: 0.0.40
codegen_flags: <defaults>
</compile_context>

<pallas_src>
import functools

import numpy as np
import jax
import jax.numpy as jnp
from jax.experimental import pallas as pl
from jax.experimental.pallas import tpu as pltpu

# ----------------------------- configuration --------------------------------
NTYPES = ["user", "item"]
IN_FEATS = {"user": 12, "item": 16}
EDGE_FEATS = 8
NUM_HEADS = 4
OUT_FEATS = 8
NEG_SLOPE = 0.2
CANONICAL_ETYPES = [
    ("user", "follows", "user"),
    ("user", "buys", "item"),
    ("item", "bought_by", "user"),
]
NUM_ETYPES = len(CANONICAL_ETYPES)

LANE = 128
VMEM_LIMIT = 32 * 1024 * 1024   # safe scoped-VMEM budget on v5e / v6e / v7x


def _round_up(x, m):
    return ((x + m - 1) // m) * m


# ------------------------------ Pallas kernels -------------------------------
def proj_kernel(x_ref, w_ref, o_ref):
    """Fused projection: o = x @ [W | W@Wl | W@Wr | 0-pad].

    One MXU push instead of three; the 128-lane output slab keeps the store
    path unmasked (lane-dense).
    """
    o_ref[...] = jnp.dot(x_ref[...], w_ref[...], preferred_element_type=jnp.float32)


def pallas_fused_projection(x, w_aug, *, row_tile=512):
    n, k = x.shape
    p = w_aug.shape[1]
    tn = min(row_tile, _round_up(n, 8))
    n_pad = _round_up(n, tn)
    x_p = jnp.pad(x, ((0, n_pad - n), (0, 0)))
    out = pl.pallas_call(
        proj_kernel,
        out_shape=jax.ShapeDtypeStruct((n_pad, p), jnp.float32),
        grid_spec=pltpu.PrefetchScalarGridSpec(
            num_scalar_prefetch=0,
            grid=(n_pad // tn,),
            in_specs=[pl.BlockSpec((tn, k), lambda i: (i, 0)),
                      pl.BlockSpec((k, p), lambda i: (0, 0))],
            out_specs=pl.BlockSpec((tn, p), lambda i: (i, 0)),
        ),
        compiler_params=pltpu.CompilerParams(
            dimension_semantics=("parallel",),
            vmem_limit_bytes=VMEM_LIMIT),
        cost_estimate=pl.CostEstimate(
            flops=2 * n_pad * k * p, transcendentals=0,
            bytes_accessed=4 * (n_pad * k + k * p + n_pad * p)),
    )(x_p, w_aug)
    return out[:n]


def gat_attn_kernel(er_ref, elpe_ref, cnt_ref, feat_ref, out_ref,
                    m_sc, l_sc, acc_sc, *,
                    num_heads, out_feats, negative_slope, out_w):
    """Flash-style edge softmax + aggregation over one (dst-tile, src-tile) pair.

    er   : (TN, H)    f32   attn_r read-out of destination nodes
    elpe : (H, TS)    f32   attn_l read-out of sources + per-etype edge bias
    cnt  : (TN, TS)   bf16  edge multiplicity (0 where no edge)
    feat : (TS, H*D)  bf16  projected source features, head-major lanes
    out  : (TN, out_w) f32  [ aggregated (H*D) | per-head logsumexp (H) | 0 ]
    m/l/acc scratch: per-head online-softmax state, resident across src tiles.
    """
    s_idx = pl.program_id(1)
    n_s = pl.num_programs(1)
    hd = num_heads * out_feats
    neg_big = jnp.float32(-1e30)

    @pl.when(s_idx == 0)
    def _():
        m_sc[...] = jnp.full_like(m_sc, neg_big)
        l_sc[...] = jnp.zeros_like(l_sc)
        acc_sc[...] = jnp.zeros_like(acc_sc)

    er = er_ref[...]
    elpe = elpe_ref[...]
    cnt = cnt_ref[...].astype(jnp.float32)
    feat = feat_ref[...]
    m_prev = m_sc[...]
    l_prev = l_sc[...]
    acc_prev = acc_sc[...]

    has_edge = cnt > 0.0
    d = out_feats
    m_cols, l_cols, acc_cols = [], [], []
    # H=4: statically unrolled.  Each (TN,TS)@(TS,D) dot underuses MXU lanes,
    # but this kernel is VALU/HBM-bound so we accept the lane waste (review).
    for h in range(num_heads):
        z = er[:, h:h + 1] + elpe[h:h + 1, :]                  # (TN, TS)
        z = jnp.maximum(z, negative_slope * z)                 # leaky-relu
        zm = jnp.where(has_edge, z, neg_big)
        m_new = jnp.maximum(m_prev[:, h:h + 1],
                            jnp.max(zm, axis=-1, keepdims=True))
        alpha = jnp.exp(m_prev[:, h:h + 1] - m_new)            # (TN, 1)
        # count-weighted softmax numerator: parallel edges share identical
        # logits, so the multiplicity reproduces per-edge softmax + sum.
        p = cnt * jnp.exp(zm - m_new)                          # 0 off-edge
        l_new = alpha * l_prev[:, h:h + 1] + jnp.sum(p, axis=-1, keepdims=True)
        part = jnp.dot(p.astype(jnp.bfloat16), feat[:, h * d:(h + 1) * d],
                       preferred_element_type=jnp.float32)     # (TN, D)
        acc_new = alpha * acc_prev[:, h * d:(h + 1) * d] + part
        m_cols.append(m_new)
        l_cols.append(l_new)
        acc_cols.append(acc_new)

    m_all = jnp.concatenate(m_cols, axis=1)                    # (TN, H)
    l_all = jnp.concatenate(l_cols, axis=1)                    # (TN, H)
    acc_all = jnp.concatenate(acc_cols, axis=1)                # (TN, H*D)
    m_sc[...] = m_all
    l_sc[...] = l_all
    acc_sc[...] = acc_all

    @pl.when(s_idx == n_s - 1)
    def _():
        l_safe = jnp.maximum(l_all, jnp.float32(1e-30))
        inv_l = pl.reciprocal(l_safe, approx=True)             # EUP slot
        # post-matmul normalization: O(TN*D) per head instead of O(TN*TS)
        agg_cols = [acc_cols[h] * inv_l[:, h:h + 1] for h in range(num_heads)]
        lse = m_all + jnp.log(l_safe)                          # (TN, H)
        pad = jnp.zeros((acc_all.shape[0], out_w - hd - num_heads), jnp.float32)
        # single lane-dense store of the whole output tile
        out_ref[...] = jnp.concatenate(agg_cols + [lse, pad], axis=1)


def pallas_gat_attention(er_dst, elpe_t, cnt, feat_cat, *, num_heads, out_feats,
                         negative_slope=NEG_SLOPE, dst_tile=256, src_tile=512):
    nd = er_dst.shape[0]
    n_src = feat_cat.shape[0]
    hd = num_heads * out_feats
    out_w = _round_up(hd + num_heads, LANE)

    tn = min(dst_tile, _round_up(nd, 16))        # 16: bf16 sublane packing of cnt
    nd_pad = _round_up(nd, tn)
    ts = min(src_tile, _round_up(n_src, LANE))
    s_pad = _round_up(n_src, ts)

    er_p = jnp.pad(er_dst, ((0, nd_pad - nd), (0, 0)))
    elpe_p = jnp.pad(elpe_t, ((0, 0), (0, s_pad - n_src)))
    cnt_p = jnp.pad(cnt, ((0, nd_pad - nd), (0, s_pad - n_src))).astype(jnp.bfloat16)
    feat_p = jnp.pad(feat_cat, ((0, s_pad - n_src), (0, 0))).astype(jnp.bfloat16)

    kernel = functools.partial(gat_attn_kernel, num_heads=num_heads,
                               out_feats=out_feats,
                               negative_slope=negative_slope, out_w=out_w)
    slab = pl.pallas_call(
        kernel,
        out_shape=jax.ShapeDtypeStruct((nd_pad, out_w), jnp.float32),
        grid_spec=pltpu.PrefetchScalarGridSpec(
            num_scalar_prefetch=0,
            grid=(nd_pad // tn, s_pad // ts),
            in_specs=[
                pl.BlockSpec((tn, num_heads), lambda i, s: (i, 0)),
                pl.BlockSpec((num_heads, ts), lambda i, s: (0, s)),
                pl.BlockSpec((tn, ts), lambda i, s: (i, s)),
                pl.BlockSpec((ts, hd), lambda i, s: (s, 0)),
            ],
            out_specs=pl.BlockSpec((tn, out_w), lambda i, s: (i, 0)),
            scratch_shapes=[pltpu.VMEM((tn, num_heads), jnp.float32),   # m
                            pltpu.VMEM((tn, num_heads), jnp.float32),   # l
                            pltpu.VMEM((tn, hd), jnp.float32)],         # acc
        ),
        compiler_params=pltpu.CompilerParams(
            dimension_semantics=("parallel", "arbitrary"),
            vmem_limit_bytes=VMEM_LIMIT),
        cost_estimate=pl.CostEstimate(
            flops=2 * nd_pad * s_pad * hd + 8 * nd_pad * s_pad * num_heads,
            transcendentals=nd_pad * s_pad * num_heads,
            bytes_accessed=(2 * nd_pad * s_pad + 2 * s_pad * hd
                            + 4 * nd_pad * out_w + 4 * nd_pad * num_heads)),
    )(er_p, elpe_p, cnt_p, feat_p)
    agg = slab[:nd, :hd]                         # (Nd, H*D)
    lse = slab[:nd, hd:hd + num_heads]           # (Nd, H)
    return agg, lse


# ------------------------------- forward glue --------------------------------
def hetero_gat_forward(nfeat, params, graph):
    H, D, EF = params["num_heads"], params["out_feats"], params["edge_feats"]
    hd = H * D
    attn_l = params["attn_l"][0]   # (H, D)
    attn_r = params["attn_r"][0]   # (H, D)
    attn_e = params["attn_e"][0]   # (H, EF)

    proj_w = _round_up(hd + 2 * H, LANE)

    feat, el, er = {}, {}, {}
    for nt in graph["ntypes"]:
        w = params["fc"][nt]                                          # (in, H*D)
        w3 = w.reshape(w.shape[0], H, D)
        wl = jnp.einsum("ihd,hd->ih", w3, attn_l)                     # W @ Wl
        wr = jnp.einsum("ihd,hd->ih", w3, attn_r)                     # W @ Wr
        pad = jnp.zeros((w.shape[0], proj_w - hd - 2 * H), jnp.float32)
        w_aug = jnp.concatenate([w, wl, wr, pad], axis=1)             # (in, 128)
        slab = pallas_fused_projection(nfeat[nt], w_aug)              # (N, 128)
        feat[nt] = slab[:, :hd]                                       # (N, H*D)
        el[nt] = slab[:, hd:hd + H]                                   # (N, H)
        er[nt] = slab[:, hd + H:hd + 2 * H]                           # (N, H)

    # per-edge-type attention bias ee[t, h] (tiny, plain JAX glue)
    e_proj = (params["edge_emb"] @ params["fc_e"]).reshape(NUM_ETYPES, H, EF)
    ee = jnp.sum(e_proj * attn_e[None], axis=-1)                      # (num_etypes, H)

    rst, attn_store = {}, {}
    for dst_nt in graph["ntypes"]:
        incoming = [(t, ce) for t, ce in enumerate(graph["canonical_etypes"])
                    if ce[2] == dst_nt]
        nd = graph["num_nodes"][dst_nt]
        if not incoming:
            rst[dst_nt] = jnp.zeros((nd, H, D), jnp.float32)
            continue

        elpe_blocks, feat_blocks, cnt_blocks = [], [], []
        for t, (src_nt, etype, _) in incoming:
            ns = graph["num_nodes"][src_nt]
            elpe_blocks.append(el[src_nt] + ee[t][None, :])           # (Ns, H)
            feat_blocks.append(feat[src_nt])                          # (Ns, H*D)
            src_idx, dst_idx = graph["edges"][etype]
            # TODO(synk): for large graphs, replace this dense count matrix
            # with scalar-prefetched CSR offsets + in-kernel iota mask.
            cnt_blocks.append(
                jnp.zeros((nd, ns), jnp.float32).at[dst_idx, src_idx].add(1.0))
        elpe_t = jnp.concatenate(elpe_blocks, axis=0).T               # (H, S)
        feat_cat = jnp.concatenate(feat_blocks, axis=0)               # (S, H*D)
        cnt = jnp.concatenate(cnt_blocks, axis=1)                     # (Nd, S) counts

        agg, lse = pallas_gat_attention(er[dst_nt], elpe_t, cnt, feat_cat,
                                        num_heads=H, out_feats=D)
        rst[dst_nt] = agg.reshape(nd, H, D)

        # Per-edge attention rebuilt from the per-destination logsumexp:
        # a_e = exp(leaky_relu(el[src] + er[dst] + ee[t]) - lse[dst])  (exact f32)
        for t, (src_nt, etype, _) in incoming:
            src_idx, dst_idx = graph["edges"][etype]
            z = el[src_nt][src_idx] + er[dst_nt][dst_idx] + ee[t][None, :]
            z = jnp.where(z >= 0.0, z, NEG_SLOPE * z)
            a_e = jnp.exp(z - lse[dst_idx])                           # (E, H)
            attn_store[etype] = a_e[:, :, None]                       # (E, H, 1)
    return rst, attn_store


# ---------------------------- deterministic setup -----------------------------
def make_params(key):
    gain = float(np.sqrt(2.0))     # nn.init.calculate_gain('relu')
    ks = jax.random.split(key, 8)
    H, D, EF = NUM_HEADS, OUT_FEATS, EDGE_FEATS

    def xavier(k, shape, fan_in, fan_out):
        std = gain * np.sqrt(2.0 / (fan_in + fan_out))
        return (std * jax.random.normal(k, shape)).astype(jnp.float32)

    fc = {nt: xavier(ks[i], (IN_FEATS[nt], H * D), IN_FEATS[nt], H * D)
          for i, nt in enumerate(NTYPES)}
    return dict(
        num_heads=H, out_feats=D, edge_feats=EF,
        fc=fc,
        fc_e=xavier(ks[2], (EF, EF * H), EF, EF * H),
        attn_l=xavier(ks[3], (1, H, D), D, H * D),
        attn_r=xavier(ks[4], (1, H, D), D, H * D),
        attn_e=xavier(ks[5], (1, H, EF), EF, H * EF),
        edge_emb=jax.random.normal(ks[6], (NUM_ETYPES, EF)).astype(jnp.float32),
    )


def make_graph():
    nu, ni = 8, 8
    follows = (np.arange(nu), (np.arange(nu) + 1) % nu)
    # "buys" includes one duplicated (user 0 -> item 0) edge to exercise the
    # multi-edge (parallel edge) path of edge_softmax.
    buys = (np.concatenate([np.arange(nu), np.arange(nu), [0]]),
            np.concatenate([np.arange(ni), (np.arange(ni) + 3) % ni, [0]]))
    bought_by = (np.arange(ni), (np.arange(ni) + 3) % nu)
    return dict(
        ntypes=NTYPES,
        num_nodes={"user": nu, "item": ni},
        canonical_etypes=CANONICAL_ETYPES,
        edges={
            "follows": (jnp.asarray(follows[0]), jnp.asarray(follows[1])),
            "buys": (jnp.asarray(buys[0]), jnp.asarray(buys[1])),
            "bought_by": (jnp.asarray(bought_by[0]), jnp.asarray(bought_by[1])),
        },
    )


# --------------------------- edge-level numpy reference ----------------------
def numpy_reference(nfeat, params, graph):
    H, D, EF = params["num_heads"], params["out_feats"], params["edge_feats"]
    feat, el, er = {}, {}, {}
    for nt in graph["ntypes"]:
        f = (np.asarray(nfeat[nt]) @ np.asarray(params["fc"][nt])).reshape(-1, H, D)
        feat[nt] = f
        el[nt] = (f * np.asarray(params["attn_l"])).sum(-1)
        er[nt] = (f * np.asarray(params["attn_r"])).sum(-1)
    e_proj = (np.asarray(params["edge_emb"]) @ np.asarray(params["fc_e"])).reshape(-1, H, EF)
    ee = (e_proj * np.asarray(params["attn_e"])).sum(-1)

    logits = {}
    for t, (snt, etype, dnt) in enumerate(graph["canonical_etypes"]):
        s_idx, d_idx = (np.asarray(a) for a in graph["edges"][etype])
        z = el[snt][s_idx] + er[dnt][d_idx] + ee[t][None, :]
        logits[etype] = np.where(z >= 0, z, NEG_SLOPE * z)

    a = {etype: np.zeros_like(v) for etype, v in logits.items()}
    rst = {nt: np.zeros((graph["num_nodes"][nt], H, D), np.float64)
           for nt in graph["ntypes"]}
    for dnt in graph["ntypes"]:
        for v in range(graph["num_nodes"][dnt]):
            entries = []
            for t, (snt, etype, dn2) in enumerate(graph["canonical_etypes"]):
                if dn2 != dnt:
                    continue
                s_idx, d_idx = (np.asarray(x) for x in graph["edges"][etype])
                for epos in np.nonzero(d_idx == v)[0]:
                    entries.append((etype, int(epos), snt, int(s_idx[epos])))
            if not entries:
                continue
            z = np.stack([logits[et][ep] for et, ep, _, _ in entries], axis=0)
            z = z - z.max(0, keepdims=True)
            w = np.exp(z)
            w = w / w.sum(0, keepdims=True)
            for k, (et, ep, snt, si) in enumerate(entries):
                a[et][ep] = w[k]
                rst[dnt][v] += w[k][:, None] * feat[snt][si]
    return rst, a


# ----------------------------------- main -------------------------------------
if __name__ == "__main__":
    key = jax.random.PRNGKey(0)
    kp, ku, ki = jax.random.split(key, 3)
    params = make_params(kp)
    graph = make_graph()
    nfeat = {
        "user": jax.random.normal(ku, (8, IN_FEATS["user"]), jnp.float32),
        "item": jax.random.normal(ki, (8, IN_FEATS["item"]), jnp.float32),
    }

    rst, res_attn = hetero_gat_forward(nfeat, params, graph)
    jax.block_until_ready(rst)
    jax.block_until_ready(res_attn)

    # sanity check against an independent edge-level numpy reference
    ref_rst, ref_attn = numpy_reference(nfeat, params, graph)
    for nt in NTYPES:
        # aggregation path uses bf16 MXU operands + approx reciprocal -> looser tol
        np.testing.assert_allclose(np.asarray(rst[nt]), ref_rst[nt],
                                   atol=2e-2, rtol=2e-2)
    for et in res_attn:
        # attention path (el/er/lse) is exact f32 -> tight tol
        np.testing.assert_allclose(np.asarray(res_attn[et])[:, :, 0], ref_attn[et],
                                   atol=2e-3, rtol=2e-3)

    print("KERNEL_OK")
</pallas_src>

<mosaic_0001>
module attributes {stable_mosaic.version = 11 : i64} {
  func.func @proj_kernel(%arg0: i32, %arg1: memref<8x12xf32, #tpu.memory_space<vmem>>, %arg2: memref<12x128xf32, #tpu.memory_space<vmem>>, %arg3: memref<8x128xf32, #tpu.memory_space<vmem>>) attributes {dimension_semantics = [#tpu.dimension_semantics<parallel>], iteration_bounds = array<i64: 1>, scalar_prefetch = 0 : i64, scratch_operands = 0 : i64, tpu.core_type = #tpu.core_type<tc>, window_params = [{transform_indices = @transform_0, window_bounds = array<i64: 8, 12>}, {pipeline_mode = #tpu.pipeline_mode<synchronous>, transform_indices = @transform_1, window_bounds = array<i64: 12, 128>}, {transform_indices = @transform_2, window_bounds = array<i64: 8, 128>}]} {
    %c0 = arith.constant 0 : index
    %c0_0 = arith.constant 0 : index
    %0 = vector.load %arg1[%c0, %c0_0] : memref<8x12xf32, #tpu.memory_space<vmem>>, vector<8x12xf32>
    %c0_1 = arith.constant 0 : index
    %c0_2 = arith.constant 0 : index
    %1 = vector.load %arg2[%c0_1, %c0_2] : memref<12x128xf32, #tpu.memory_space<vmem>>, vector<12x128xf32>
    %cst = arith.constant dense<0.000000e+00> : vector<8x128xf32>
    %2 = tpu.matmul %0, %1, %cst {dimension_numbers = #tpu.dot_dimension_numbers<[1], [0], [0], [1], [0, 0, 1, 1], [], []>} : vector<8x12xf32>, vector<12x128xf32>, vector<8x128xf32> -> vector<8x128xf32>
    %c0_3 = arith.constant 0 : index
    %c0_4 = arith.constant 0 : index
    %3 = vector.load %arg3[%c0_3, %c0_4] : memref<8x128xf32, #tpu.memory_space<vmem>>, vector<8x128xf32>
    tpu.vector_store %arg3[%c0_3, %c0_4], %2 {strides = array<i32>} : memref<8x128xf32, #tpu.memory_space<vmem>>, vector<8x128xf32>,
    return
  }
  func.func @transform_0(%arg0: i32) -> (i32, i32) {
    %c0_i32 = arith.constant 0 : i32
    %c0_i32_0 = arith.constant 0 : i32
    return %arg0, %c0_i32 : i32, i32
  }
  func.func @transform_1(%arg0: i32) -> (i32, i32) {
    %c0_i32 = arith.constant 0 : i32
    %c0_i32_0 = arith.constant 0 : i32
    %c0_i32_1 = arith.constant 0 : i32
    return %c0_i32, %c0_i32_0 : i32, i32
  }
  func.func @transform_2(%arg0: i32) -> (i32, i32) {
    %c0_i32 = arith.constant 0 : i32
    %c0_i32_0 = arith.constant 0 : i32
    return %arg0, %c0_i32 : i32, i32
  }
}

</mosaic_0001>

<llo_original>
// kernel: tpu_custom_call.1
$region0: #{tpu_custom_call.1}
  #allocation0 [shape = 'u32[]', space=smem, size = 0x4, offset = 0x4, fixed_abs, tag = 'smem constant byte address 0x4 - core index']
  #allocation1 [shape = 'u32[144,128]{1,0:T(1,128)}', space=vmem, size = 0x12000, scoped, tag = 'internal scratch']
  %s0 = inlined_call_operand.hbm [shape: f32[8,12], index: 0, kind: input, shape index: {}]
  %s1 = inlined_call_operand.hbm [shape: f32[12,128], index: 1, kind: input, shape index: {}]
  %s2 = inlined_call_operand.hbm [shape: f32[8,128], index: 2, kind: output, shape index: {}]
  %s3 = sld [smem:[#allocation0]]
  $region26: #{tpu_custom_call.1} parent=0
    _
  %s5 = ssub.s32 1, %s3
  %s6 = scalar_select 0, %s5, %s3
  $region1: #{tpu_custom_call.1} parent=0
    #allocation2 [shape = 'u8[4096]{0}', space=vmem, size = 0x1000, scoped, tag = 'input window, operand 0, single buffered']
    #allocation3 [shape = 's32[1]{0}', space=sflag, size = 0x4, scoped, tag = 'scoped memory for tpu_custom_call.1']
    #allocation4 [shape = 's32[1]{0}', space=sflag, size = 0x4, scoped, tag = 'scoped memory for tpu_custom_call.1']
    #allocation5 [shape = 'u8[8192]{0}', space=vmem, size = 0x2000, scoped, tag = 'input window, operand 1, single buffered']
    #allocation6 [shape = 's32[1]{0}', space=sflag, size = 0x4, scoped, tag = 'scoped memory for tpu_custom_call.1']
    #allocation7 [shape = 'u8[4096]{0}', space=vmem, size = 0x1000, scoped, tag = 'output window, operand 0, single buffered']
    %7 = vsyncpa [#allocation3], 0
    %8 = vsyncpa [#allocation6], 0
    %9 = vsyncpa [#allocation4], 0
    // Predicated region
    $region2: #{tpu_custom_call.1} parent=1 // pred_check
      _
    $region3: #{tpu_custom_call.1} parent=1 // pred_check_branch
      %11 = sbr.rel (0) target = $region5
    $region4: #{tpu_custom_call.1} parent=1 // pred_region
      %s13 = ssub.s32 128, 128
      %14 = vsyncadd [#allocation3], %s13
      %s16 = sshll.u32 [#allocation2], 4
      %s17 = int_to_ptr.vmem [resolvable:$true] %s16
      %19 = dma.hbm_to_vmem [thread:$0]  %s0, 128, %s17, [#allocation3]
    $region5: #{tpu_custom_call.1} parent=1 // pred_fallthru
      _
    // Predicated region
    $region6: #{tpu_custom_call.1} parent=1 // pred_check
      _
    $region7: #{tpu_custom_call.1} parent=1 // pred_check_branch
      %21 = sbr.rel (0) target = $region9
    $region8: #{tpu_custom_call.1} parent=1 // pred_region
      %s23 = ssub.s32 256, 256
      %24 = vsyncadd [#allocation6], %s23
      %s25 = sshll.u32 [#allocation5], 4
      %s26 = int_to_ptr.vmem [resolvable:$true] %s25
      %31 = dma.hbm_to_vmem [thread:$0]  %s1, 256, %s26, [#allocation6], 128, 128, 8
    $region9: #{tpu_custom_call.1} parent=1 // pred_fallthru
      _
    // Predicated region
    $region10: #{tpu_custom_call.1} parent=1 // pred_check
      _
    $region11: #{tpu_custom_call.1} parent=1 // pred_check_branch
      %33 = sbr.rel (0) target = $region13
    $region12: #{tpu_custom_call.1} parent=1 // pred_region
      %34 = dma.done [#allocation3], 128
    $region13: #{tpu_custom_call.1} parent=1 // pred_fallthru
      _
    // Predicated region
    $region14: #{tpu_custom_call.1} parent=1 // pred_check
      _
    $region15: #{tpu_custom_call.1} parent=1 // pred_check_branch
      %36 = sbr.rel (0) target = $region17
    $region16: #{tpu_custom_call.1} parent=1 // pred_region
      %37 = dma.done [#allocation6], 256
    $region17: #{tpu_custom_call.1} parent=1 // pred_fallthru
      _
    %v38 = vld [vmem:[#allocation2] sm:$0xff]
    %v39 = vld [vmem:[#allocation5] sm:$0xff]
    %v40 = vld [vmem:[#allocation5 + $0x8] sm:$0xf]
    %vm41 = vcmask 97280
    %v43 = vsel %vm41, %v38, 0
    %vm45 = vcmask 1043456
    %v47 = vsel %vm45, %v40, 0
    %49 = vmatprep.subr.mxu0 0.0
    %50 = vmatpush1.msra.mxu0 %v39
    %51 = vmatprep.subr.mxu0 0.0
    %52 = vmatpush1.msra.mxu0 %v47
    %53 = vmatprep.subr.mxu0 0.0
    %54 = vmatpush1.msra.mxu0 0.0
    %55 = vmatprep.subr.mxu0 0.0
    %56 = vmatpush1.msra.mxu0 0.0
    %57 = vmatprep.subr.mxu0 0.0
    %58 = vmatpush1.msra.mxu0 0.0
    %59 = vmatprep.subr.mxu0 0.0
    %60 = vmatpush1.msra.mxu0 0.0
    %61 = vmatprep.subr.mxu0 0.0
    %62 = vmatpush1.msra.mxu0 0.0
    %63 = vmatprep.subr.mxu0 0.0
    %64 = vmatpush1.msra.mxu0 0.0
    %65 = vmatprep.subr.mxu0 0.0
    %66 = vmatpush1.msra.mxu0 0.0
    %67 = vmatprep.subr.mxu0 0.0
    %68 = vmatpush1.msra.mxu0 0.0
    %69 = vmatprep.subr.mxu0 0.0
    %70 = vmatpush1.msra.mxu0 0.0
    %71 = vmatprep.subr.mxu0 0.0
    %72 = vmatpush1.msra.mxu0 0.0
    %73 = vmatprep.subr.mxu0 0.0
    %74 = vmatpush1.msra.mxu0 0.0
    %75 = vmatprep.subr.mxu0 0.0
    %76 = vmatpush1.msra.mxu0 0.0
    %77 = vmatprep.subr.mxu0 0.0
    %78 = vmatpush1.msra.mxu0 0.0
    %79 = vmatprep.subr.mxu0 0.0
    %80 = vmatpush1.msra.mxu0 0.0
    %81 = vmatprep.subr.mxu0 0.0
    %82 = vmatpush1.msra.mxu0 0.0
    %83 = vmatprep.subr.mxu0 0.0
    %84 = vmatpush1.msra.mxu0 0.0
    %85 = vmatprep.subr.mxu0 0.0
    %86 = vmatpush1.msra.mxu0 0.0
    %87 = vmatprep.subr.mxu0 0.0
    %88 = vmatpush1.msra.mxu0 0.0
    %89 = vmatprep.subr.mxu0 0.0
    %90 = vmatpush1.msra.mxu0 0.0
    %91 = vmatprep.subr.mxu0 0.0
    %92 = vmatpush1.msra.mxu0 0.0
    %93 = vmatprep.subr.mxu0 0.0
    %94 = vmatpush1.msra.mxu0 0.0
    %95 = vmatprep.subr.mxu0 0.0
    %96 = vmatpush1.msra.mxu0 0.0
    %97 = vmatprep.subr.mxu0 0.0
    %98 = vmatpush1.msra.mxu0 0.0
    %99 = vmatprep.subr.mxu0 0.0
    %100 = vmatpush1.msra.mxu0 0.0
    %101 = vmatprep.subr.mxu0 0.0
    %102 = vmatpush1.msra.mxu0 0.0
    %103 = vmatprep.subr.mxu0 0.0
    %104 = vmatpush1.msra.mxu0 0.0
    %105 = vmatprep.subr.mxu0 0.0
    %106 = vmatpush1.msra.mxu0 0.0
    %107 = vmatprep.subr.mxu0 0.0
    %108 = vmatpush1.msra.mxu0 0.0
    %109 = vmatprep.subr.mxu0 0.0
    %110 = vmatpush1.msra.mxu0 0.0
    %111 = vmatprep.subr.mxu0 0.0
    %112 = vmatpush1.msra.mxu0 0.0
    %113 = vmatprep.mubr.f32.mxu0 0.0
    %114 = vmatmul.mubr.f32.gmra.mrb[0].mxu0 %v43
    %v115 = vpop.f32.mrb[0].mxu0
    %v116 = vadd.f32 0.0, %v115
    %v117 = vpop.f32.mrb[0].mxu0
    %118 = vdwg.mxu0
    %119 = vst [vmem:[#allocation7] sm:$0xff] %v116
    // Predicated region
    $region18: #{tpu_custom_call.1} parent=1 // pred_check
      _
    $region19: #{tpu_custom_call.1} parent=1 // pred_check_branch
      %121 = sbr.rel (0) target = $region21
    $region20: #{tpu_custom_call.1} parent=1 // pred_region
      %s123 = ssub.s32 128, 128
      %124 = vsyncadd [#allocation4], %s123
      %s126 = sshll.u32 [#allocation7], 4
      %s127 = int_to_ptr.vmem [resolvable:$true] %s126
      %129 = dma.vmem_to_hbm [thread:$0]  %s127, 128, %s2, [#allocation4]
    $region21: #{tpu_custom_call.1} parent=1 // pred_fallthru
      _
    // Predicated region
    $region22: #{tpu_custom_call.1} parent=1 // pred_check
      _
    $region23: #{tpu_custom_call.1} parent=1 // pred_check_branch
      %131 = sbr.rel (0) target = $region25
    $region24: #{tpu_custom_call.1} parent=1 // pred_region
      %132 = dma.done [#allocation4], 128
    $region25: #{tpu_custom_call.1} parent=1 // pred_fallthru
      _
    %133 = vsyncpa [#allocation3], 1
    %134 = vsyncpa [#allocation6], 1
    %135 = vsyncpa [#allocation4], 1

</llo_original>
